<compile_context>
chip_gen: v7x
topology: tpu7x:2x2x1
jax: 0.10.0
libtpu: 0.0.40
codegen_flags: <defaults>
</compile_context>

<pallas_src>
import jax
import jax.numpy as jnp
from jax.experimental import pallas as pl
from jax.experimental.pallas import tpu as pltpu


def expert_kernel(x_ref, w1_ref, b1_ref, w2_ref, b2_ref, o_ref):
    # First linear + ReLU (fused); accumulate in f32 on the MXU.
    h = jnp.dot(x_ref[...], w1_ref[...], preferred_element_type=jnp.float32)
    h = jnp.maximum(h + b1_ref[...], 0.0)          # b1 is (1, D1): row broadcast
    # Second linear (single downcast of h to the weight dtype).
    y = jnp.dot(h.astype(w2_ref.dtype), w2_ref[...],
                preferred_element_type=jnp.float32)
    o_ref[...] = (y + b2_ref[...]).astype(o_ref.dtype)


def _round_up(x, m):
    return ((x + m - 1) // m) * m


def _detect_num_tensorcores():
    """v7x has 2 TensorCores per chip; v5e/v6e have 1. Conservative fallback = 1."""
    try:
        kind = jax.devices()[0].device_kind.lower()
        if "v7" in kind:
            return 2
    except Exception:
        pass
    return 1


def _tile_vmem_bytes(tm, D0, D1, D2, itemsize):
    x_bytes = 2 * tm * D0 * itemsize            # double-buffered activation tile
    o_bytes = 2 * tm * D2 * itemsize            # double-buffered output tile
    h_bytes = tm * D1 * 4                       # f32 hidden intermediate
    w_bytes = (D0 * D1 + D1 + D1 * D2 + D2) * itemsize  # resident weights/biases
    return x_bytes + o_bytes + h_bytes + w_bytes


_VMEM_TILE_BUDGET = 48 * 1024 * 1024            # conservative for v7x's 64 MiB physical


def _make_call(B, D0, D1, D2, out_dtype, tm_eff, grid, vmem_limit,
               single_buffer_weights):
    resident_kwargs = (
        dict(pipeline_mode=pl.Buffered(1)) if single_buffer_weights else {}
    )
    in_specs = [
        # Batch-tiled activations (pipelined per grid step).
        pl.BlockSpec((tm_eff, D0), lambda i: (i, 0)),
        # Weights/biases: constant index_map -> VMEM-resident across grid steps.
        pl.BlockSpec((D0, D1), lambda i: (0, 0), **resident_kwargs),
        pl.BlockSpec((1, D1), lambda i: (0, 0), **resident_kwargs),
        pl.BlockSpec((D1, D2), lambda i: (0, 0), **resident_kwargs),
        pl.BlockSpec((1, D2), lambda i: (0, 0), **resident_kwargs),
    ]
    return pl.pallas_call(
        expert_kernel,
        out_shape=jax.ShapeDtypeStruct((B, D2), out_dtype),
        grid_spec=pltpu.PrefetchScalarGridSpec(
            num_scalar_prefetch=0,
            grid=grid,
            in_specs=in_specs,
            out_specs=pl.BlockSpec((tm_eff, D2), lambda i: (i, 0)),
        ),
        compiler_params=pltpu.CompilerParams(
            # Independent batch tiles: shard grid steps across both TCs on v7x.
            dimension_semantics=("parallel",),
            vmem_limit_bytes=vmem_limit,
        ),
    )


def expert_forward(x, w1_t, b1_r, w2_t, b2_r, *, tm=1024, num_cores=None):
    """Fused Expert MLP: ReLU(x @ w1_t + b1) @ w2_t + b2.

    x:    (B, D0)          f32 or bf16
    w1_t: (D0, D1)  -- already transposed to (in, out) layout at init time
    b1_r: (1, D1)
    w2_t: (D1, D2)
    b2_r: (1, D2)
    """
    B, D0 = x.shape
    D1 = w1_t.shape[1]
    D2 = w2_t.shape[1]

    itemsize = jnp.dtype(x.dtype).itemsize
    sublane = {4: 8, 2: 16, 1: 32}.get(itemsize, 8)   # dtype-aware sublane tile

    if num_cores is None:
        num_cores = _detect_num_tensorcores()

    # Batch tile: big (amortize per-step overhead), rounded to the sublane tile.
    tm_eff = min(tm, _round_up(B, sublane))

    # v7x: make sure there are >=2 grid steps when possible so the "parallel"
    # batch axis actually shards across both TensorCores.
    if num_cores > 1 and B > sublane:
        per_core = _round_up(-(-B // num_cores), sublane)
        tm_eff = max(sublane, min(tm_eff, per_core))

    # Shrink the tile (not the output width) until the VMEM footprint fits a
    # conservative budget that works on every generation (v7x = 64 MiB physical).
    while tm_eff > sublane and _tile_vmem_bytes(tm_eff, D0, D1, D2, itemsize) > _VMEM_TILE_BUDGET:
        tm_eff = max(sublane, _round_up(tm_eff // 2, sublane))

    # If one tile covers the whole batch, use the exact batch size: a full-dim
    # block is always legal and avoids any padded rows at all.
    if tm_eff >= B:
        tm_eff = B

    grid = (pl.cdiv(B, tm_eff),)

    # Explicit scoped-VMEM budget with headroom (>= every generation's default).
    tile_bytes = _tile_vmem_bytes(tm_eff, D0, D1, D2, itemsize)
    vmem_limit = int(min(max(2 * tile_bytes, 32 * 1024 * 1024), 56 * 1024 * 1024))

    args = (x, w1_t, b1_r, w2_t, b2_r)
    try:
        # Single-buffer the constant-index (resident) weight/bias blocks.
        return _make_call(B, D0, D1, D2, x.dtype, tm_eff, grid, vmem_limit,
                          single_buffer_weights=True)(*args)
    except Exception:
        # Fallback if this jax build rejects pl.Buffered(1) on resident blocks.
        return _make_call(B, D0, D1, D2, x.dtype, tm_eff, grid, vmem_limit,
                          single_buffer_weights=False)(*args)


def init_expert_params(w1, b1, w2, b2):
    """One-time layout prep (outside the hot path): torch (out, in) -> (in, out),
    biases -> (1, D) rows."""
    return w1.T, b1.reshape(1, -1), w2.T, b2.reshape(1, -1)


def reference_forward(x, w1, b1, w2, b2):
    h = jnp.maximum(x @ w1.T + b1, 0.0)
    return h @ w2.T + b2


if __name__ == "__main__":
    # Shapes consistent with Expert(dims=[32, 64, 16]).
    D0, D1, D2 = 32, 64, 16
    key = jax.random.PRNGKey(0)

    def make_params(k, dtype):
        kw1, kb1, kw2, kb2 = jax.random.split(k, 4)
        w1 = (jax.random.normal(kw1, (D1, D0), jnp.float32) * 0.1).astype(dtype)
        b1 = (jax.random.normal(kb1, (D1,), jnp.float32) * 0.1).astype(dtype)
        w2 = (jax.random.normal(kw2, (D2, D1), jnp.float32) * 0.1).astype(dtype)
        b2 = (jax.random.normal(kb2, (D2,), jnp.float32) * 0.1).astype(dtype)
        return w1, b1, w2, b2

    k1, k2, k3, kp1, kp2, kp3 = jax.random.split(key, 6)

    # --- Test 1: batch=8, f32 (the module's nominal small case) ---
    x = jax.random.normal(k1, (8, D0), dtype=jnp.float32)
    w1, b1, w2, b2 = make_params(kp1, jnp.float32)
    params = jax.block_until_ready(init_expert_params(w1, b1, w2, b2))
    out = jax.block_until_ready(expert_forward(x, *params))
    ref = reference_forward(x, w1, b1, w2, b2)
    assert out.shape == (8, D2)
    assert jnp.allclose(out, ref, atol=1e-4, rtol=1e-4), "f32 mismatch vs reference"

    # --- Test 2: ragged batch (B not a multiple of the tile) + multi-tile grid ---
    xb = jax.random.normal(k2, (300, D0), dtype=jnp.float32)
    w1, b1, w2, b2 = make_params(kp2, jnp.float32)
    params = jax.block_until_ready(init_expert_params(w1, b1, w2, b2))
    out = jax.block_until_ready(expert_forward(xb, *params, tm=128))
    ref = reference_forward(xb, w1, b1, w2, b2)
    assert out.shape == (300, D2)
    assert jnp.allclose(out, ref, atol=5e-4, rtol=5e-4), "ragged f32 mismatch"

    # --- Test 3: bf16 activations/weights (f32 accumulation inside the kernel) ---
    xh = jax.random.normal(k3, (64, D0), dtype=jnp.float32).astype(jnp.bfloat16)
    w1, b1, w2, b2 = make_params(kp3, jnp.bfloat16)
    params = jax.block_until_ready(init_expert_params(w1, b1, w2, b2))
    out = jax.block_until_ready(expert_forward(xh, *params))
    ref = reference_forward(xh.astype(jnp.float32), w1.astype(jnp.float32),
                            b1.astype(jnp.float32), w2.astype(jnp.float32),
                            b2.astype(jnp.float32))
    assert out.shape == (64, D2)
    assert jnp.allclose(out.astype(jnp.float32), ref, atol=5e-2, rtol=5e-2), \
        "bf16 mismatch vs f32 reference"

    print("KERNEL_OK")
</pallas_src>

<mosaic_0001>
module attributes {stable_mosaic.version = 11 : i64} {
  func.func @expert_kernel(%arg0: i32, %arg1: memref<8x32xf32, #tpu.memory_space<vmem>>, %arg2: memref<32x64xf32, #tpu.memory_space<vmem>>, %arg3: memref<1x64xf32, #tpu.memory_space<vmem>>, %arg4: memref<64x16xf32, #tpu.memory_space<vmem>>, %arg5: memref<1x16xf32, #tpu.memory_space<vmem>>, %arg6: memref<8x16xf32, #tpu.memory_space<vmem>>) attributes {dimension_semantics = [#tpu.dimension_semantics<parallel>], iteration_bounds = array<i64: 1>, scalar_prefetch = 0 : i64, scratch_operands = 0 : i64, tpu.core_type = #tpu.core_type<tc>, window_params = [{transform_indices = @transform_0, window_bounds = array<i64: 8, 32>}, {pipeline_mode = #tpu.pipeline_mode<synchronous>, transform_indices = @transform_1, window_bounds = array<i64: 32, 64>}, {pipeline_mode = #tpu.pipeline_mode<synchronous>, transform_indices = @transform_2, window_bounds = array<i64: 1, 64>}, {pipeline_mode = #tpu.pipeline_mode<synchronous>, transform_indices = @transform_3, window_bounds = array<i64: 64, 16>}, {pipeline_mode = #tpu.pipeline_mode<synchronous>, transform_indices = @transform_4, window_bounds = array<i64: 1, 16>}, {transform_indices = @transform_5, window_bounds = array<i64: 8, 16>}]} {
    %c0 = arith.constant 0 : index
    %c0_0 = arith.constant 0 : index
    %0 = vector.load %arg1[%c0, %c0_0] : memref<8x32xf32, #tpu.memory_space<vmem>>, vector<8x32xf32>
    %c0_1 = arith.constant 0 : index
    %c0_2 = arith.constant 0 : index
    %1 = vector.load %arg2[%c0_1, %c0_2] : memref<32x64xf32, #tpu.memory_space<vmem>>, vector<32x64xf32>
    %cst = arith.constant dense<0.000000e+00> : vector<8x64xf32>
    %2 = tpu.matmul %0, %1, %cst {dimension_numbers = #tpu.dot_dimension_numbers<[1], [0], [0], [1], [0, 0, 1, 1], [], []>} : vector<8x32xf32>, vector<32x64xf32>, vector<8x64xf32> -> vector<8x64xf32>
    %c0_3 = arith.constant 0 : index
    %c0_4 = arith.constant 0 : index
    %3 = vector.load %arg3[%c0_3, %c0_4] : memref<1x64xf32, #tpu.memory_space<vmem>>, vector<1x64xf32>
    %4 = vector.broadcast %3 : vector<1x64xf32> to vector<8x64xf32>
    %5 = arith.addf %2, %4 : vector<8x64xf32>
    %cst_5 = arith.constant 0.000000e+00 : f32
    %6 = vector.broadcast %cst_5 : f32 to vector<8x64xf32>
    %7 = arith.maximumf %5, %6 : vector<8x64xf32>
    %c0_6 = arith.constant 0 : index
    %c0_7 = arith.constant 0 : index
    %8 = vector.load %arg4[%c0_6, %c0_7] : memref<64x16xf32, #tpu.memory_space<vmem>>, vector<64x16xf32>
    %cst_8 = arith.constant dense<0.000000e+00> : vector<8x16xf32>
    %9 = tpu.matmul %7, %8, %cst_8 {dimension_numbers = #tpu.dot_dimension_numbers<[1], [0], [0], [1], [0, 0, 1, 1], [], []>} : vector<8x64xf32>, vector<64x16xf32>, vector<8x16xf32> -> vector<8x16xf32>
    %c0_9 = arith.constant 0 : index
    %c0_10 = arith.constant 0 : index
    %10 = vector.load %arg5[%c0_9, %c0_10] : memref<1x16xf32, #tpu.memory_space<vmem>>, vector<1x16xf32>
    %11 = vector.broadcast %10 : vector<1x16xf32> to vector<8x16xf32>
    %12 = arith.addf %9, %11 : vector<8x16xf32>
    %c0_11 = arith.constant 0 : index
    %c0_12 = arith.constant 0 : index
    %13 = vector.load %arg6[%c0_11, %c0_12] : memref<8x16xf32, #tpu.memory_space<vmem>>, vector<8x16xf32>
    tpu.vector_store %arg6[%c0_11, %c0_12], %12 {strides = array<i32>} : memref<8x16xf32, #tpu.memory_space<vmem>>, vector<8x16xf32>,
    return
  }
  func.func @transform_0(%arg0: i32) -> (i32, i32) {
    %c0_i32 = arith.constant 0 : i32
    %c0_i32_0 = arith.constant 0 : i32
    return %arg0, %c0_i32 : i32, i32
  }
  func.func @transform_1(%arg0: i32) -> (i32, i32) {
    %c0_i32 = arith.constant 0 : i32
    %c0_i32_0 = arith.constant 0 : i32
    %c0_i32_1 = arith.constant 0 : i32
    return %c0_i32, %c0_i32_0 : i32, i32
  }
  func.func @transform_2(%arg0: i32) -> (i32, i32) {
    %c0_i32 = arith.constant 0 : i32
    %c0_i32_0 = arith.constant 0 : i32
    %c0_i32_1 = arith.constant 0 : i32
    return %c0_i32, %c0_i32_0 : i32, i32
  }
  func.func @transform_3(%arg0: i32) -> (i32, i32) {
    %c0_i32 = arith.constant 0 : i32
    %c0_i32_0 = arith.constant 0 : i32
    %c0_i32_1 = arith.constant 0 : i32
    return %c0_i32, %c0_i32_0 : i32, i32
  }
  func.func @transform_4(%arg0: i32) -> (i32, i32) {
    %c0_i32 = arith.constant 0 : i32
    %c0_i32_0 = arith.constant 0 : i32
    %c0_i32_1 = arith.constant 0 : i32
    return %c0_i32, %c0_i32_0 : i32, i32
  }
  func.func @transform_5(%arg0: i32) -> (i32, i32) {
    %c0_i32 = arith.constant 0 : i32
    %c0_i32_0 = arith.constant 0 : i32
    return %arg0, %c0_i32 : i32, i32
  }
}

module attributes {stable_mosaic.version = 11 : i64} {
  func.func @expert_kernel(%arg0: i32, %arg1: memref<8x32xf32, #tpu.memory_space<vmem>>, %arg2: memref<32x64xf32, #tpu.memory_space<vmem>>, %arg3: memref<1x64xf32, #tpu.memory_space<vmem>>, %arg4: memref<64x16xf32, #tpu.memory_space<vmem>>, %arg5: memref<1x16xf32, #tpu.memory_space<vmem>>, %arg6: memref<8x16xf32, #tpu.memory_space<vmem>>) attributes {dimension_semantics = [#tpu.dimension_semantics<parallel>], iteration_bounds = array<i64: 1>, scalar_prefetch = 0 : i64, scratch_operands = 0 : i64, tpu.core_type = #tpu.core_type<tc>, window_params = [{transform_indices = @transform_0, window_bounds = array<i64: 8, 32>}, {pipeline_mode = #tpu.pipeline_mode<synchronous>, transform_indices = @transform_1, window_bounds = array<i64: 32, 64>}, {pipeline_mode = #tpu.pipeline_mode<synchronous>, transform_indices = @transform_2, window_bounds = array<i64: 1, 64>}, {pipeline_mode = #tpu.pipeline_mode<synchronous>, transform_indices = @transform_3, window_bounds = array<i64: 64, 16>}, {pipeline_mode = #tpu.pipeline_mode<synchronous>, transform_indices = @transform_4, window_bounds = array<i64: 1, 16>}, {transform_indices = @transform_5, window_bounds = array<i64: 8, 16>}]} {
    %c0 = arith.constant 0 : index
    %c0_0 = arith.constant 0 : index
    %0 = vector.load %arg1[%c0, %c0_0] : memref<8x32xf32, #tpu.memory_space<vmem>>, vector<8x32xf32>
    %c0_1 = arith.constant 0 : index
    %c0_2 = arith.constant 0 : index
    %1 = vector.load %arg2[%c0_1, %c0_2] : memref<32x64xf32, #tpu.memory_space<vmem>>, vector<32x64xf32>
    %cst = arith.constant dense<0.000000e+00> : vector<8x64xf32>
    %2 = tpu.matmul %0, %1, %cst {dimension_numbers = #tpu.dot_dimension_numbers<[1], [0], [0], [1], [0, 0, 1, 1], [], []>} : vector<8x32xf32>, vector<32x64xf32>, vector<8x64xf32> -> vector<8x64xf32>
    %c0_3 = arith.constant 0 : index
    %c0_4 = arith.constant 0 : index
    %3 = vector.load %arg3[%c0_3, %c0_4] : memref<1x64xf32, #tpu.memory_space<vmem>>, vector<1x64xf32>
    %4 = vector.broadcast %3 : vector<1x64xf32> to vector<8x64xf32>
    %5 = arith.addf %2, %4 : vector<8x64xf32>
    %cst_5 = arith.constant 0.000000e+00 : f32
    %6 = vector.broadcast %cst_5 : f32 to vector<8x64xf32>
    %7 = arith.maximumf %5, %6 : vector<8x64xf32>
    %c0_6 = arith.constant 0 : index
    %c0_7 = arith.constant 0 : index
    %8 = vector.load %arg4[%c0_6, %c0_7] : memref<64x16xf32, #tpu.memory_space<vmem>>, vector<64x16xf32>
    %cst_8 = arith.constant dense<0.000000e+00> : vector<8x16xf32>
    %9 = tpu.matmul %7, %8, %cst_8 {dimension_numbers = #tpu.dot_dimension_numbers<[1], [0], [0], [1], [0, 0, 1, 1], [], []>} : vector<8x64xf32>, vector<64x16xf32>, vector<8x16xf32> -> vector<8x16xf32>
    %c0_9 = arith.constant 0 : index
    %c0_10 = arith.constant 0 : index
    %10 = vector.load %arg5[%c0_9, %c0_10] : memref<1x16xf32, #tpu.memory_space<vmem>>, vector<1x16xf32>
    %11 = vector.broadcast %10 : vector<1x16xf32> to vector<8x16xf32>
    %12 = arith.addf %9, %11 : vector<8x16xf32>
    %c0_11 = arith.constant 0 : index
    %c0_12 = arith.constant 0 : index
    %13 = vector.load %arg6[%c0_11, %c0_12] : memref<8x16xf32, #tpu.memory_space<vmem>>, vector<8x16xf32>
    tpu.vector_store %arg6[%c0_11, %c0_12], %12 {strides = array<i32>} : memref<8x16xf32, #tpu.memory_space<vmem>>, vector<8x16xf32>,
    return
  }
  func.func @transform_0(%arg0: i32) -> (i32, i32) {
    %c0_i32 = arith.constant 0 : i32
    %c0_i32_0 = arith.constant 0 : i32
    return %arg0, %c0_i32 : i32, i32
  }
  func.func @transform_1(%arg0: i32) -> (i32, i32) {
    %c0_i32 = arith.constant 0 : i32
    %c0_i32_0 = arith.constant 0 : i32
    %c0_i32_1 = arith.constant 0 : i32
    return %c0_i32, %c0_i32_0 : i32, i32
  }
  func.func @transform_2(%arg0: i32) -> (i32, i32) {
    %c0_i32 = arith.constant 0 : i32
    %c0_i32_0 = arith.constant 0 : i32
    %c0_i32_1 = arith.constant 0 : i32
    return %c0_i32, %c0_i32_0 : i32, i32
  }
  func.func @transform_3(%arg0: i32) -> (i32, i32) {
    %c0_i32 = arith.constant 0 : i32
    %c0_i32_0 = arith.constant 0 : i32
    %c0_i32_1 = arith.constant 0 : i32
    return %c0_i32, %c0_i32_0 : i32, i32
  }
  func.func @transform_4(%arg0: i32) -> (i32, i32) {
    %c0_i32 = arith.constant 0 : i32
    %c0_i32_0 = arith.constant 0 : i32
    %c0_i32_1 = arith.constant 0 : i32
    return %c0_i32, %c0_i32_0 : i32, i32
  }
  func.func @transform_5(%arg0: i32) -> (i32, i32) {
    %c0_i32 = arith.constant 0 : i32
    %c0_i32_0 = arith.constant 0 : i32
    return %arg0, %c0_i32 : i32, i32
  }
}

</mosaic_0001>

<llo_original>
// kernel: tpu_custom_call.1
$region0: #{tpu_custom_call.1}
  #allocation0 [shape = 'u32[]', space=smem, size = 0x4, offset = 0x4, fixed_abs, tag = 'smem constant byte address 0x4 - core index']
  #allocation1 [shape = 'u32[144,128]{1,0:T(1,128)}', space=vmem, size = 0x12000, scoped, tag = 'internal scratch']
  %s0 = inlined_call_operand.vmem [shape: f32[8,32], index: 0, kind: input, shape index: {}]
  %s1 = inlined_call_operand.vmem [shape: f32[32,64], index: 1, kind: input, shape index: {}]
  %s2 = inlined_call_operand.vmem [shape: f32[1,64], index: 2, kind: input, shape index: {}]
  %s3 = inlined_call_operand.vmem [shape: f32[64,16], index: 3, kind: input, shape index: {}]
  %s4 = inlined_call_operand.vmem [shape: f32[1,16], index: 4, kind: input, shape index: {}]
  %s5 = inlined_call_operand.hbm [shape: f32[8,16], index: 5, kind: output, shape index: {}]
  %s6 = sld [smem:[#allocation0]]
  $region30: #{tpu_custom_call.1} parent=0
    _
  %s8 = ssub.s32 1, %s6
  %s9 = scalar_select 0, %s8, %s6
  $region1: #{tpu_custom_call.1} parent=0
    #allocation2 [shape = 'u8[4096]{0}', space=vmem, size = 0x1000, scoped, tag = 'output window, operand 0, single buffered']
    #allocation3 [shape = 's32[1]{0}', space=sflag, size = 0x4, scoped, tag = 'scoped memory for tpu_custom_call.1']
    %10 = vsyncpa [#allocation3], 0
    // Predicated region
    $region2: #{tpu_custom_call.1} parent=1 // pred_check
      _
    $region3: #{tpu_custom_call.1} parent=1 // pred_check_branch
      %12 = sbr.rel (0) target = $region5
    $region4: #{tpu_custom_call.1} parent=1 // pred_region
      _
    $region5: #{tpu_custom_call.1} parent=1 // pred_fallthru
      _
    // Predicated region
    $region6: #{tpu_custom_call.1} parent=1 // pred_check
      _
    $region7: #{tpu_custom_call.1} parent=1 // pred_check_branch
      %14 = sbr.rel (0) target = $region9
    $region8: #{tpu_custom_call.1} parent=1 // pred_region
      _
    $region9: #{tpu_custom_call.1} parent=1 // pred_fallthru
      _
    // Predicated region
    $region10: #{tpu_custom_call.1} parent=1 // pred_check
      _
    $region11: #{tpu_custom_call.1} parent=1 // pred_check_branch
      %16 = sbr.rel (0) target = $region13
    $region12: #{tpu_custom_call.1} parent=1 // pred_region
      _
    $region13: #{tpu_custom_call.1} parent=1 // pred_fallthru
      _
    // Predicated region
    $region14: #{tpu_custom_call.1} parent=1 // pred_check
      _
    $region15: #{tpu_custom_call.1} parent=1 // pred_check_branch
      %18 = sbr.rel (0) target = $region17
    $region16: #{tpu_custom_call.1} parent=1 // pred_region
      _
    $region17: #{tpu_custom_call.1} parent=1 // pred_fallthru
      _
    // Predicated region
    $region18: #{tpu_custom_call.1} parent=1 // pred_check
      _
    $region19: #{tpu_custom_call.1} parent=1 // pred_check_branch
      %20 = sbr.rel (0) target = $region21
    $region20: #{tpu_custom_call.1} parent=1 // pred_region
      _
    $region21: #{tpu_custom_call.1} parent=1 // pred_fallthru
      _
    %v21 = vld [vmem:[%s0] sm:$0xff]
    %v22 = vld [vmem:[%s1] sm:$0xff]
    %v23 = vld [vmem:[%s1 + $0x8] sm:$0xff]
    %v24 = vld [vmem:[%s1 + $0x10] sm:$0xff]
    %v25 = vld [vmem:[%s1 + $0x18] sm:$0xff]
    %v26 = vld [vmem:[%s2] sm:$0x1]
    %v28 = vlaneseq
    %v29 = vshrl.u32 %v28, 7
    %v30 = vsub.s32 0, %v29
    %v31 = vrot.slane %v26, %v30
    %vm33 = vcmask 261120
    %v35 = vsel %vm33, %v21, 0
    %37 = vmatprep.subr.mxu0 0.0
    %38 = vmatpush1.msra.mxu0 %v22
    %39 = vmatprep.subr.mxu0 0.0
    %40 = vmatpush1.msra.mxu0 %v23
    %41 = vmatprep.subr.mxu0 0.0
    %42 = vmatpush1.msra.mxu0 %v24
    %43 = vmatprep.subr.mxu0 0.0
    %44 = vmatpush1.msra.mxu0 %v25
    %45 = vmatprep.subr.mxu0 0.0
    %46 = vmatpush1.msra.mxu0 0.0
    %47 = vmatprep.subr.mxu0 0.0
    %48 = vmatpush1.msra.mxu0 0.0
    %49 = vmatprep.subr.mxu0 0.0
    %50 = vmatpush1.msra.mxu0 0.0
    %51 = vmatprep.subr.mxu0 0.0
    %52 = vmatpush1.msra.mxu0 0.0
    %53 = vmatprep.subr.mxu0 0.0
    %54 = vmatpush1.msra.mxu0 0.0
    %55 = vmatprep.subr.mxu0 0.0
    %56 = vmatpush1.msra.mxu0 0.0
    %57 = vmatprep.subr.mxu0 0.0
    %58 = vmatpush1.msra.mxu0 0.0
    %59 = vmatprep.subr.mxu0 0.0
    %60 = vmatpush1.msra.mxu0 0.0
    %61 = vmatprep.subr.mxu0 0.0
    %62 = vmatpush1.msra.mxu0 0.0
    %63 = vmatprep.subr.mxu0 0.0
    %64 = vmatpush1.msra.mxu0 0.0
    %65 = vmatprep.subr.mxu0 0.0
    %66 = vmatpush1.msra.mxu0 0.0
    %67 = vmatprep.subr.mxu0 0.0
    %68 = vmatpush1.msra.mxu0 0.0
    %69 = vmatprep.subr.mxu0 0.0
    %70 = vmatpush1.msra.mxu0 0.0
    %71 = vmatprep.subr.mxu0 0.0
    %72 = vmatpush1.msra.mxu0 0.0
    %73 = vmatprep.subr.mxu0 0.0
    %74 = vmatpush1.msra.mxu0 0.0
    %75 = vmatprep.subr.mxu0 0.0
    %76 = vmatpush1.msra.mxu0 0.0
    %77 = vmatprep.subr.mxu0 0.0
    %78 = vmatpush1.msra.mxu0 0.0
    %79 = vmatprep.subr.mxu0 0.0
    %80 = vmatpush1.msra.mxu0 0.0
    %81 = vmatprep.subr.mxu0 0.0
    %82 = vmatpush1.msra.mxu0 0.0
    %83 = vmatprep.subr.mxu0 0.0
    %84 = vmatpush1.msra.mxu0 0.0
    %85 = vmatprep.subr.mxu0 0.0
    %86 = vmatpush1.msra.mxu0 0.0
    %87 = vmatprep.subr.mxu0 0.0
    %88 = vmatpush1.msra.mxu0 0.0
    %89 = vmatprep.subr.mxu0 0.0
    %90 = vmatpush1.msra.mxu0 0.0
    %91 = vmatprep.subr.mxu0 0.0
    %92 = vmatpush1.msra.mxu0 0.0
    %93 = vmatprep.subr.mxu0 0.0
    %94 = vmatpush1.msra.mxu0 0.0
    %95 = vmatprep.subr.mxu0 0.0
    %96 = vmatpush1.msra.mxu0 0.0
    %97 = vmatprep.subr.mxu0 0.0
    %98 = vmatpush1.msra.mxu0 0.0
    %99 = vmatprep.subr.mxu0 0.0
    %100 = vmatpush1.msra.mxu0 0.0
    %101 = vmatprep.mubr.f32.mxu0 0.0
    %102 = vmatmul.mubr.f32.gmra.mrb[0].mxu0 %v35
    %v103 = vpop.f32.mrb[0].mxu0
    %v104 = vadd.f32 %v31, %v103
    %v105 = vpop.f32.mrb[0].mxu0
    %106 = vdwg.mxu0
    %v107 = vmax.f32 %v104, 0.0
    %v108 = vld [vmem:[%s3] sm:$0xff]
    %v109 = vld [vmem:[%s3 + $0x8] sm:$0xff]
    %v110 = vld [vmem:[%s3 + $0x10] sm:$0xff]
    %v111 = vld [vmem:[%s3 + $0x18] sm:$0xff]
    %v112 = vld [vmem:[%s3 + $0x20] sm:$0xff]
    %v113 = vld [vmem:[%s3 + $0x28] sm:$0xff]
    %v114 = vld [vmem:[%s3 + $0x30] sm:$0xff]
    %v115 = vld [vmem:[%s3 + $0x38] sm:$0xff]
    %v116 = vld [vmem:[%s4] sm:$0x1]
    %v118 = vlaneseq
    %v119 = vshrl.u32 %v118, 7
    %v120 = vsub.s32 0, %v119
    %v121 = vrot.slane %v116, %v120
    %vm123 = vcmask 523264
    %v125 = vsel %vm123, %v107, 0
    %127 = vmatprep.subr.mxu0 0.0
    %128 = vmatpush1.msra.mxu0 %v108
    %129 = vmatprep.subr.mxu0 0.0
    %130 = vmatpush1.msra.mxu0 %v109
    %131 = vmatprep.subr.mxu0 0.0
    %132 = vmatpush1.msra.mxu0 %v110
    %133 = vmatprep.subr.mxu0 0.0
    %134 = vmatpush1.msra.mxu0 %v111
    %135 = vmatprep.subr.mxu0 0.0
    %136 = vmatpush1.msra.mxu0 %v112
    %137 = vmatprep.subr.mxu0 0.0
    %138 = vmatpush1.msra.mxu0 %v113
    %139 = vmatprep.subr.mxu0 0.0
    %140 = vmatpush1.msra.mxu0 %v114
    %141 = vmatprep.subr.mxu0 0.0
    %142 = vmatpush1.msra.mxu0 %v115
    %143 = vmatprep.subr.mxu0 0.0
    %144 = vmatpush1.msra.mxu0 0.0
    %145 = vmatprep.subr.mxu0 0.0
    %146 = vmatpush1.msra.mxu0 0.0
    %147 = vmatprep.subr.mxu0 0.0
    %148 = vmatpush1.msra.mxu0 0.0
    %149 = vmatprep.subr.mxu0 0.0
    %150 = vmatpush1.msra.mxu0 0.0
    %151 = vmatprep.subr.mxu0 0.0
    %152 = vmatpush1.msra.mxu0 0.0
    %153 = vmatprep.subr.mxu0 0.0
    %154 = vmatpush1.msra.mxu0 0.0
    %155 = vmatprep.subr.mxu0 0.0
    %156 = vmatpush1.msra.mxu0 0.0
    %157 = vmatprep.subr.mxu0 0.0
    %158 = vmatpush1.msra.mxu0 0.0
    %159 = vmatprep.subr.mxu0 0.0
    %160 = vmatpush1.msra.mxu0 0.0
    %161 = vmatprep.subr.mxu0 0.0
    %162 = vmatpush1.msra.mxu0 0.0
    %163 = vmatprep.subr.mxu0 0.0
    %164 = vmatpush1.msra.mxu0 0.0
    %165 = vmatprep.subr.mxu0 0.0
    %166 = vmatpush1.msra.mxu0 0.0
    %167 = vmatprep.subr.mxu0 0.0
    %168 = vmatpush1.msra.mxu0 0.0
    %169 = vmatprep.subr.mxu0 0.0
    %170 = vmatpush1.msra.mxu0 0.0
    %171 = vmatprep.subr.mxu0 0.0
    %172 = vmatpush1.msra.mxu0 0.0
    %173 = vmatprep.subr.mxu0 0.0
    %174 = vmatpush1.msra.mxu0 0.0
    %175 = vmatprep.subr.mxu0 0.0
    %176 = vmatpush1.msra.mxu0 0.0
    %177 = vmatprep.subr.mxu0 0.0
    %178 = vmatpush1.msra.mxu0 0.0
    %179 = vmatprep.subr.mxu0 0.0
    %180 = vmatpush1.msra.mxu0 0.0
    %181 = vmatprep.subr.mxu0 0.0
    %182 = vmatpush1.msra.mxu0 0.0
    %183 = vmatprep.subr.mxu0 0.0
    %184 = vmatpush1.msra.mxu0 0.0
    %185 = vmatprep.subr.mxu0 0.0
    %186 = vmatpush1.msra.mxu0 0.0
    %187 = vmatprep.subr.mxu0 0.0
    %188 = vmatpush1.msra.mxu0 0.0
    %189 = vmatprep.subr.mxu0 0.0
    %190 = vmatpush1.msra.mxu0 0.0
    %191 = vmatprep.mubr.f32.mxu0 0.0
    %192 = vmatmul.mubr.f32.gmra.mrb[0].mxu0 %v125
    %v193 = vpop.f32.mrb[0].mxu0
    %v194 = vadd.f32 %v121, %v193
    %v195 = vpop.f32.mrb[0].mxu0
    %196 = vdwg.mxu0
    %vm197 = vcmask 130048
    %198 = vst.msk [vmem:[#allocation2] sm:$0xff] %vm197, %v194
    // Predicated region
    $region22: #{tpu_custom_call.1} parent=1 // pred_check
      _
    $region23: #{tpu_custom_call.1} parent=1 // pred_check_branch
      %200 = sbr.rel (0) target = $region25
    $region24: #{tpu_custom_call.1} parent=1 // pred_region
      %s202 = ssub.s32 128, 128
      %203 = vsyncadd [#allocation3], %s202
      %s205 = sshll.u32 [#allocation2], 4
      %s206 = int_to_ptr.vmem [resolvable:$true] %s205
      %208 = dma.vmem_to_hbm [thread:$0]  %s206, 128, %s5, [#allocation3]
    $region25: #{tpu_custom_call.1} parent=1 // pred_fallthru
      _
    // Predicated region
    $region26: #{tpu_custom_call.1} parent=1 // pred_check
      _
    $region27: #{tpu_custom_call.1} parent=1 // pred_check_branch
      %210 = sbr.rel (0) target = $region29
    $region28: #{tpu_custom_call.1} parent=1 // pred_region
      %211 = dma.done [#allocation3], 128
    $region29: #{tpu_custom_call.1} parent=1 // pred_fallthru
      _
    %212 = vsyncpa [#allocation3], 1

// kernel: tpu_custom_call.1
$region0: #{tpu_custom_call.1}
  #allocation0 [shape = 'u32[]', space=smem, size = 0x4, offset = 0x4, fixed_abs, tag = 'smem constant byte address 0x4 - core index']
  #allocation1 [shape = 'u32[144,128]{1,0:T(1,128)}', space=vmem, size = 0x12000, scoped, tag = 'internal scratch']
  %s0 = inlined_call_operand.vmem [shape: f32[8,32], index: 0, kind: input, shape index: {}]
  %s1 = inlined_call_operand.vmem [shape: f32[32,64], index: 1, kind: input, shape index: {}]
  %s2 = inlined_call_operand.vmem [shape: f32[1,64], index: 2, kind: input, shape index: {}]
  %s3 = inlined_call_operand.vmem [shape: f32[64,16], index: 3, kind: input, shape index: {}]
  %s4 = inlined_call_operand.vmem [shape: f32[1,16], index: 4, kind: input, shape index: {}]
  %s5 = inlined_call_operand.hbm [shape: f32[8,16], index: 5, kind: output, shape index: {}]
  %s6 = sld [smem:[#allocation0]]
  $region30: #{tpu_custom_call.1} parent=0
    _
  %s8 = ssub.s32 1, %s6
  %s9 = scalar_select 0, %s8, %s6
  $region1: #{tpu_custom_call.1} parent=0
    #allocation2 [shape = 'u8[4096]{0}', space=vmem, size = 0x1000, scoped, tag = 'output window, operand 0, single buffered']
    #allocation3 [shape = 's32[1]{0}', space=sflag, size = 0x4, scoped, tag = 'scoped memory for tpu_custom_call.1']
    %10 = vsyncpa [#allocation3], 0
    // Predicated region
    $region2: #{tpu_custom_call.1} parent=1 // pred_check
      _
    $region3: #{tpu_custom_call.1} parent=1 // pred_check_branch
      %12 = sbr.rel (0) target = $region5
    $region4: #{tpu_custom_call.1} parent=1 // pred_region
      _
    $region5: #{tpu_custom_call.1} parent=1 // pred_fallthru
      _
    // Predicated region
    $region6: #{tpu_custom_call.1} parent=1 // pred_check
      _
    $region7: #{tpu_custom_call.1} parent=1 // pred_check_branch
      %14 = sbr.rel (0) target = $region9
    $region8: #{tpu_custom_call.1} parent=1 // pred_region
      _
    $region9: #{tpu_custom_call.1} parent=1 // pred_fallthru
      _
    // Predicated region
    $region10: #{tpu_custom_call.1} parent=1 // pred_check
      _
    $region11: #{tpu_custom_call.1} parent=1 // pred_check_branch
      %16 = sbr.rel (0) target = $region13
    $region12: #{tpu_custom_call.1} parent=1 // pred_region
      _
    $region13: #{tpu_custom_call.1} parent=1 // pred_fallthru
      _
    // Predicated region
    $region14: #{tpu_custom_call.1} parent=1 // pred_check
      _
    $region15: #{tpu_custom_call.1} parent=1 // pred_check_branch
      %18 = sbr.rel (0) target = $region17
    $region16: #{tpu_custom_call.1} parent=1 // pred_region
      _
    $region17: #{tpu_custom_call.1} parent=1 // pred_fallthru
      _
    // Predicated region
    $region18: #{tpu_custom_call.1} parent=1 // pred_check
      _
    $region19: #{tpu_custom_call.1} parent=1 // pred_check_branch
      %20 = sbr.rel (0) target = $region21
    $region20: #{tpu_custom_call.1} parent=1 // pred_region
      _
    $region21: #{tpu_custom_call.1} parent=1 // pred_fallthru
      _
    %v21 = vld [vmem:[%s0] sm:$0xff]
    %v22 = vld [vmem:[%s1] sm:$0xff]
    %v23 = vld [vmem:[%s1 + $0x8] sm:$0xff]
    %v24 = vld [vmem:[%s1 + $0x10] sm:$0xff]
    %v25 = vld [vmem:[%s1 + $0x18] sm:$0xff]
    %v26 = vld [vmem:[%s2] sm:$0x1]
    %v28 = vlaneseq
    %v29 = vshrl.u32 %v28, 7
    %v30 = vsub.s32 0, %v29
    %v31 = vrot.slane %v26, %v30
    %vm33 = vcmask 261120
    %v35 = vsel %vm33, %v21, 0
    %37 = vmatprep.subr.mxu0 0.0
    %38 = vmatpush1.msra.mxu0 %v22
    %39 = vmatprep.subr.mxu0 0.0
    %40 = vmatpush1.msra.mxu0 %v23
    %41 = vmatprep.subr.mxu0 0.0
    %42 = vmatpush1.msra.mxu0 %v24
    %43 = vmatprep.subr.mxu0 0.0
    %44 = vmatpush1.msra.mxu0 %v25
    %45 = vmatprep.subr.mxu0 0.0
    %46 = vmatpush1.msra.mxu0 0.0
    %47 = vmatprep.subr.mxu0 0.0
    %48 = vmatpush1.msra.mxu0 0.0
    %49 = vmatprep.subr.mxu0 0.0
    %50 = vmatpush1.msra.mxu0 0.0
    %51 = vmatprep.subr.mxu0 0.0
    %52 = vmatpush1.msra.mxu0 0.0
    %53 = vmatprep.subr.mxu0 0.0
    %54 = vmatpush1.msra.mxu0 0.0
    %55 = vmatprep.subr.mxu0 0.0
    %56 = vmatpush1.msra.mxu0 0.0
    %57 = vmatprep.subr.mxu0 0.0
    %58 = vmatpush1.msra.mxu0 0.0
    %59 = vmatprep.subr.mxu0 0.0
    %60 = vmatpush1.msra.mxu0 0.0
    %61 = vmatprep.subr.mxu0 0.0
    %62 = vmatpush1.msra.mxu0 0.0
    %63 = vmatprep.subr.mxu0 0.0
    %64 = vmatpush1.msra.mxu0 0.0
    %65 = vmatprep.subr.mxu0 0.0
    %66 = vmatpush1.msra.mxu0 0.0
    %67 = vmatprep.subr.mxu0 0.0
    %68 = vmatpush1.msra.mxu0 0.0
    %69 = vmatprep.subr.mxu0 0.0
    %70 = vmatpush1.msra.mxu0 0.0
    %71 = vmatprep.subr.mxu0 0.0
    %72 = vmatpush1.msra.mxu0 0.0
    %73 = vmatprep.subr.mxu0 0.0
    %74 = vmatpush1.msra.mxu0 0.0
    %75 = vmatprep.subr.mxu0 0.0
    %76 = vmatpush1.msra.mxu0 0.0
    %77 = vmatprep.subr.mxu0 0.0
    %78 = vmatpush1.msra.mxu0 0.0
    %79 = vmatprep.subr.mxu0 0.0
    %80 = vmatpush1.msra.mxu0 0.0
    %81 = vmatprep.subr.mxu0 0.0
    %82 = vmatpush1.msra.mxu0 0.0
    %83 = vmatprep.subr.mxu0 0.0
    %84 = vmatpush1.msra.mxu0 0.0
    %85 = vmatprep.subr.mxu0 0.0
    %86 = vmatpush1.msra.mxu0 0.0
    %87 = vmatprep.subr.mxu0 0.0
    %88 = vmatpush1.msra.mxu0 0.0
    %89 = vmatprep.subr.mxu0 0.0
    %90 = vmatpush1.msra.mxu0 0.0
    %91 = vmatprep.subr.mxu0 0.0
    %92 = vmatpush1.msra.mxu0 0.0
    %93 = vmatprep.subr.mxu0 0.0
    %94 = vmatpush1.msra.mxu0 0.0
    %95 = vmatprep.subr.mxu0 0.0
    %96 = vmatpush1.msra.mxu0 0.0
    %97 = vmatprep.subr.mxu0 0.0
    %98 = vmatpush1.msra.mxu0 0.0
    %99 = vmatprep.subr.mxu0 0.0
    %100 = vmatpush1.msra.mxu0 0.0
    %101 = vmatprep.mubr.f32.mxu0 0.0
    %102 = vmatmul.mubr.f32.gmra.mrb[0].mxu0 %v35
    %v103 = vpop.f32.mrb[0].mxu0
    %v104 = vadd.f32 %v31, %v103
    %v105 = vpop.f32.mrb[0].mxu0
    %106 = vdwg.mxu0
    %v107 = vmax.f32 %v104, 0.0
    %v108 = vld [vmem:[%s3] sm:$0xff]
    %v109 = vld [vmem:[%s3 + $0x8] sm:$0xff]
    %v110 = vld [vmem:[%s3 + $0x10] sm:$0xff]
    %v111 = vld [vmem:[%s3 + $0x18] sm:$0xff]
    %v112 = vld [vmem:[%s3 + $0x20] sm:$0xff]
    %v113 = vld [vmem:[%s3 + $0x28] sm:$0xff]
    %v114 = vld [vmem:[%s3 + $0x30] sm:$0xff]
    %v115 = vld [vmem:[%s3 + $0x38] sm:$0xff]
    %v116 = vld [vmem:[%s4] sm:$0x1]
    %v118 = vlaneseq
    %v119 = vshrl.u32 %v118, 7
    %v120 = vsub.s32 0, %v119
    %v121 = vrot.slane %v116, %v120
    %vm123 = vcmask 523264
    %v125 = vsel %vm123, %v107, 0
    %127 = vmatprep.subr.mxu0 0.0
    %128 = vmatpush1.msra.mxu0 %v108
    %129 = vmatprep.subr.mxu0 0.0
    %130 = vmatpush1.msra.mxu0 %v109
    %131 = vmatprep.subr.mxu0 0.0
    %132 = vmatpush1.msra.mxu0 %v110
    %133 = vmatprep.subr.mxu0 0.0
    %134 = vmatpush1.msra.mxu0 %v111
    %135 = vmatprep.subr.mxu0 0.0
    %136 = vmatpush1.msra.mxu0 %v112
    %137 = vmatprep.subr.mxu0 0.0
    %138 = vmatpush1.msra.mxu0 %v113
    %139 = vmatprep.subr.mxu0 0.0
    %140 = vmatpush1.msra.mxu0 %v114
    %141 = vmatprep.subr.mxu0 0.0
    %142 = vmatpush1.msra.mxu0 %v115
    %143 = vmatprep.subr.mxu0 0.0
    %144 = vmatpush1.msra.mxu0 0.0
    %145 = vmatprep.subr.mxu0 0.0
    %146 = vmatpush1.msra.mxu0 0.0
    %147 = vmatprep.subr.mxu0 0.0
    %148 = vmatpush1.msra.mxu0 0.0
    %149 = vmatprep.subr.mxu0 0.0
    %150 = vmatpush1.msra.mxu0 0.0
    %151 = vmatprep.subr.mxu0 0.0
    %152 = vmatpush1.msra.mxu0 0.0
    %153 = vmatprep.subr.mxu0 0.0
    %154 = vmatpush1.msra.mxu0 0.0
    %155 = vmatprep.subr.mxu0 0.0
    %156 = vmatpush1.msra.mxu0 0.0
    %157 = vmatprep.subr.mxu0 0.0
    %158 = vmatpush1.msra.mxu0 0.0
    %159 = vmatprep.subr.mxu0 0.0
    %160 = vmatpush1.msra.mxu0 0.0
    %161 = vmatprep.subr.mxu0 0.0
    %162 = vmatpush1.msra.mxu0 0.0
    %163 = vmatprep.subr.mxu0 0.0
    %164 = vmatpush1.msra.mxu0 0.0
    %165 = vmatprep.subr.mxu0 0.0
    %166 = vmatpush1.msra.mxu0 0.0
    %167 = vmatprep.subr.mxu0 0.0
    %168 = vmatpush1.msra.mxu0 0.0
    %169 = vmatprep.subr.mxu0 0.0
    %170 = vmatpush1.msra.mxu0 0.0
    %171 = vmatprep.subr.mxu0 0.0
    %172 = vmatpush1.msra.mxu0 0.0
    %173 = vmatprep.subr.mxu0 0.0
    %174 = vmatpush1.msra.mxu0 0.0
    %175 = vmatprep.subr.mxu0 0.0
    %176 = vmatpush1.msra.mxu0 0.0
    %177 = vmatprep.subr.mxu0 0.0
    %178 = vmatpush1.msra.mxu0 0.0
    %179 = vmatprep.subr.mxu0 0.0
    %180 = vmatpush1.msra.mxu0 0.0
    %181 = vmatprep.subr.mxu0 0.0
    %182 = vmatpush1.msra.mxu0 0.0
    %183 = vmatprep.subr.mxu0 0.0
    %184 = vmatpush1.msra.mxu0 0.0
    %185 = vmatprep.subr.mxu0 0.0
    %186 = vmatpush1.msra.mxu0 0.0
    %187 = vmatprep.subr.mxu0 0.0
    %188 = vmatpush1.msra.mxu0 0.0
    %189 = vmatprep.subr.mxu0 0.0
    %190 = vmatpush1.msra.mxu0 0.0
    %191 = vmatprep.mubr.f32.mxu0 0.0
    %192 = vmatmul.mubr.f32.gmra.mrb[0].mxu0 %v125
    %v193 = vpop.f32.mrb[0].mxu0
    %v194 = vadd.f32 %v121, %v193
    %v195 = vpop.f32.mrb[0].mxu0
    %196 = vdwg.mxu0
    %vm197 = vcmask 130048
    %198 = vst.msk [vmem:[#allocation2] sm:$0xff] %vm197, %v194
    // Predicated region
    $region22: #{tpu_custom_call.1} parent=1 // pred_check
      _
    $region23: #{tpu_custom_call.1} parent=1 // pred_check_branch
      %200 = sbr.rel (0) target = $region25
    $region24: #{tpu_custom_call.1} parent=1 // pred_region
      %s202 = ssub.s32 128, 128
      %203 = vsyncadd [#allocation3], %s202
      %s205 = sshll.u32 [#allocation2], 4
      %s206 = int_to_ptr.vmem [resolvable:$true] %s205
      %208 = dma.vmem_to_hbm [thread:$0]  %s206, 128, %s5, [#allocation3]
    $region25: #{tpu_custom_call.1} parent=1 // pred_fallthru
      _
    // Predicated region
    $region26: #{tpu_custom_call.1} parent=1 // pred_check
      _
    $region27: #{tpu_custom_call.1} parent=1 // pred_check_branch
      %210 = sbr.rel (0) target = $region29
    $region28: #{tpu_custom_call.1} parent=1 // pred_region
      %211 = dma.done [#allocation3], 128
    $region29: #{tpu_custom_call.1} parent=1 // pred_fallthru
      _
    %212 = vsyncpa [#allocation3], 1

</llo_original>
